<compile_context>
chip_gen: v7x
topology: tpu7x:2x2x1
jax: 0.10.0
libtpu: 0.0.40
codegen_flags: <defaults>
</compile_context>

<pallas_src>
import functools

import jax
import jax.numpy as jnp
from jax.experimental import pallas as pl
from jax.experimental.pallas import tpu as pltpu

_LANE = 128      # lane width: last dims padded to a multiple of this
_SUBLANE = 8     # sublane width: batch tiles are multiples of this


def _round_up(n, m):
    return ((n + m - 1) // m) * m


def _mlp_math(x, w1, b1, w2, b2, w3, b3, bits1, bits2, keep_threshold, inv_keep):
    """Shared f32 forward math on one (tile_b, *) block. Weights are (in, out)."""
    h = jnp.dot(x, w1, preferred_element_type=jnp.float32) + b1
    h = jnp.maximum(h, 0.0)
    if bits1 is not None:  # inverted dropout via integer-threshold compare
        keep = bits1 < jnp.uint32(keep_threshold)
        h = jnp.where(keep, h * inv_keep, jnp.zeros_like(h))

    h = jnp.dot(h, w2, preferred_element_type=jnp.float32) + b2
    h = jnp.maximum(h, 0.0)
    if bits2 is not None:
        keep = bits2 < jnp.uint32(keep_threshold)
        h = jnp.where(keep, h * inv_keep, jnp.zeros_like(h))

    return jnp.dot(h, w3, preferred_element_type=jnp.float32) + b3


def _eval_kernel(x_ref, w1_ref, b1_ref, w2_ref, b2_ref, w3_ref, b3_ref, o_ref):
    out = _mlp_math(
        x_ref[...].astype(jnp.float32),
        w1_ref[...], b1_ref[...], w2_ref[...], b2_ref[...], w3_ref[...], b3_ref[...],
        None, None, 0, 1.0)
    o_ref[...] = out.astype(o_ref.dtype)


def _train_kernel(x_ref, bits1_ref, bits2_ref,
                  w1_ref, b1_ref, w2_ref, b2_ref, w3_ref, b3_ref, o_ref,
                  *, keep_threshold, inv_keep):
    out = _mlp_math(
        x_ref[...].astype(jnp.float32),
        w1_ref[...], b1_ref[...], w2_ref[...], b2_ref[...], w3_ref[...], b3_ref[...],
        bits1_ref[...], bits2_ref[...], keep_threshold, inv_keep)
    o_ref[...] = out.astype(o_ref.dtype)


def base_network_forward(x, params, *, dropout_p, training=False, rng_key=None,
                         tile_b=512):
    """Forward pass of BaseNetwork.

    params: dict w1,b1,w2,b2,w3,b3 in PyTorch Linear layout (out,in) / (out,).
    dropout_p/training/tile_b must be static if wrapped in jax.jit.
    """
    if training and not (0.0 <= float(dropout_p) < 1.0):
        raise ValueError("dropout_p must be in [0, 1) when training")

    B, F = x.shape
    H = params["w1"].shape[0]
    O = params["w3"].shape[0]

    # Lane-dense feature dims; batch tiles aligned to sublanes.
    F_p = _round_up(F, _LANE)
    H_p = _round_up(H, _LANE)
    O_p = _round_up(O, _LANE)
    tile_b = min(int(tile_b), _round_up(B, _SUBLANE))
    B_p = _round_up(B, tile_b)
    nb = B_p // tile_b

    f32 = jnp.float32
    # Pre-transpose to (in, out) and zero-pad to lane-dense shapes (padding columns
    # are exact zeros through ReLU/dropout/zero weight rows, so the math is unchanged).
    w1 = jnp.pad(params["w1"].T.astype(f32), ((0, F_p - F), (0, H_p - H)))
    w2 = jnp.pad(params["w2"].T.astype(f32), ((0, H_p - H), (0, H_p - H)))
    w3 = jnp.pad(params["w3"].T.astype(f32), ((0, H_p - H), (0, O_p - O)))
    b1 = jnp.pad(params["b1"].astype(f32), (0, H_p - H)).reshape(1, H_p)
    b2 = jnp.pad(params["b2"].astype(f32), (0, H_p - H)).reshape(1, H_p)
    b3 = jnp.pad(params["b3"].astype(f32), (0, O_p - O)).reshape(1, O_p)
    xp = jnp.pad(x, ((0, B_p - B), (0, F_p - F)))

    # Streamed (per-batch-tile) specs vs VMEM-resident (constant block) specs.
    def row_spec(cols):
        return pl.BlockSpec((tile_b, cols), lambda i: (i, 0))

    def resident(shape):
        return pl.BlockSpec(shape, lambda i: (0, 0))

    weight_specs = [
        resident((F_p, H_p)), resident((1, H_p)),
        resident((H_p, H_p)), resident((1, H_p)),
        resident((H_p, O_p)), resident((1, O_p)),
    ]

    compiler_params = pltpu.CompilerParams(
        dimension_semantics=("parallel",),        # megacore sharding on v7x
        vmem_limit_bytes=64 * 1024 * 1024,        # budget against v7x's 64 MiB VMEM
    )

    use_dropout = bool(training) and float(dropout_p) > 0.0
    if use_dropout:
        if rng_key is None:
            raise ValueError("rng_key is required when training with dropout_p > 0")
        keep_prob = 1.0 - float(dropout_p)
        keep_threshold = min(int(round(keep_prob * 2.0 ** 32)), 2 ** 32 - 1)
        k1, k2 = jax.random.split(rng_key)
        # Independent per-element masks (also independent across batch tiles).
        bits1 = jax.random.bits(k1, (B_p, H_p), dtype=jnp.uint32)
        bits2 = jax.random.bits(k2, (B_p, H_p), dtype=jnp.uint32)
        kernel = functools.partial(_train_kernel,
                                   keep_threshold=keep_threshold,
                                   inv_keep=1.0 / keep_prob)
        in_specs = [row_spec(F_p), row_spec(H_p), row_spec(H_p)] + weight_specs
        operands = (xp, bits1, bits2, w1, b1, w2, b2, w3, b3)
    else:
        kernel = _eval_kernel
        in_specs = [row_spec(F_p)] + weight_specs
        operands = (xp, w1, b1, w2, b2, w3, b3)

    out_padded = pl.pallas_call(
        kernel,
        out_shape=jax.ShapeDtypeStruct((B_p, O_p), x.dtype),
        grid=(nb,),
        in_specs=in_specs,
        out_specs=row_spec(O_p),
        compiler_params=compiler_params,
    )(*operands)

    return out_padded[:B, :O]


def init_params(key, in_features, hidden_dimensions, out_features):
    """Deterministic init matching torch.nn.Linear's default U(-1/sqrt(fan_in), +)."""
    ks = jax.random.split(key, 6)

    def lin(kw, kb, fan_in, fan_out):
        bound = 1.0 / jnp.sqrt(fan_in)
        w = jax.random.uniform(kw, (fan_out, fan_in), jnp.float32, -bound, bound)
        b = jax.random.uniform(kb, (fan_out,), jnp.float32, -bound, bound)
        return w, b

    w1, b1 = lin(ks[0], ks[1], in_features, hidden_dimensions)
    w2, b2 = lin(ks[2], ks[3], hidden_dimensions, hidden_dimensions)
    w3, b3 = lin(ks[4], ks[5], hidden_dimensions, out_features)
    return {"w1": w1, "b1": b1, "w2": w2, "b2": b2, "w3": w3, "b3": b3}


if __name__ == "__main__":
    key = jax.random.PRNGKey(0)
    k_param, k_x, k_drop = jax.random.split(key, 3)

    in_features = 32
    hidden_dimensions = 32
    out_features = 8
    batch = 8
    dropout_p = 0.1

    params = init_params(k_param, in_features, hidden_dimensions, out_features)
    x = jax.random.normal(k_x, (batch, in_features), dtype=jnp.float32)

    # jit so the weight transpose / lane padding constant-folds with the kernel call.
    fwd = jax.jit(base_network_forward,
                  static_argnames=("dropout_p", "training", "tile_b"))

    # Eval-mode forward (dropout is identity, like PyTorch .eval()) -- deterministic.
    out = jax.block_until_ready(fwd(x, params, dropout_p=dropout_p, training=False))

    # Plain-JAX reference for the eval-mode path (highest precision dots).
    def ref(x, p):
        hp = jax.lax.Precision.HIGHEST
        h = jnp.maximum(jnp.dot(x, p["w1"].T, precision=hp) + p["b1"], 0.0)
        h = jnp.maximum(jnp.dot(h, p["w2"].T, precision=hp) + p["b2"], 0.0)
        return jnp.dot(h, p["w3"].T, precision=hp) + p["b3"]

    expected = ref(x, params)
    assert out.shape == (batch, out_features)
    assert jnp.allclose(out, expected, atol=1e-3, rtol=1e-3), "mismatch vs reference"

    # Training-mode forward (in-kernel dropout driven by host-generated bits).
    out_train = jax.block_until_ready(
        fwd(x, params, dropout_p=dropout_p, training=True, rng_key=k_drop))
    assert out_train.shape == (batch, out_features)
    assert bool(jnp.all(jnp.isfinite(out_train)))

    print("KERNEL_OK")
</pallas_src>

<mosaic_0001>
module attributes {stable_mosaic.version = 11 : i64} {
  func.func @_eval_kernel(%arg0: i32, %arg1: memref<8x128xf32, #tpu.memory_space<vmem>>, %arg2: memref<128x128xf32, #tpu.memory_space<vmem>>, %arg3: memref<1x128xf32, #tpu.memory_space<vmem>>, %arg4: memref<128x128xf32, #tpu.memory_space<vmem>>, %arg5: memref<1x128xf32, #tpu.memory_space<vmem>>, %arg6: memref<128x128xf32, #tpu.memory_space<vmem>>, %arg7: memref<1x128xf32, #tpu.memory_space<vmem>>, %arg8: memref<8x128xf32, #tpu.memory_space<vmem>>) attributes {dimension_semantics = [#tpu.dimension_semantics<parallel>], iteration_bounds = array<i64: 1>, scalar_prefetch = 0 : i64, scratch_operands = 0 : i64, tpu.core_type = #tpu.core_type<tc>, window_params = [{transform_indices = @transform_0, window_bounds = array<i64: 8, 128>}, {pipeline_mode = #tpu.pipeline_mode<synchronous>, transform_indices = @transform_1, window_bounds = array<i64: 128, 128>}, {pipeline_mode = #tpu.pipeline_mode<synchronous>, transform_indices = @transform_2, window_bounds = array<i64: 1, 128>}, {pipeline_mode = #tpu.pipeline_mode<synchronous>, transform_indices = @transform_3, window_bounds = array<i64: 128, 128>}, {pipeline_mode = #tpu.pipeline_mode<synchronous>, transform_indices = @transform_4, window_bounds = array<i64: 1, 128>}, {pipeline_mode = #tpu.pipeline_mode<synchronous>, transform_indices = @transform_5, window_bounds = array<i64: 128, 128>}, {pipeline_mode = #tpu.pipeline_mode<synchronous>, transform_indices = @transform_6, window_bounds = array<i64: 1, 128>}, {transform_indices = @transform_7, window_bounds = array<i64: 8, 128>}]} {
    %c0 = arith.constant 0 : index
    %c0_0 = arith.constant 0 : index
    %0 = vector.load %arg1[%c0, %c0_0] : memref<8x128xf32, #tpu.memory_space<vmem>>, vector<8x128xf32>
    %c0_1 = arith.constant 0 : index
    %c0_2 = arith.constant 0 : index
    %1 = vector.load %arg2[%c0_1, %c0_2] : memref<128x128xf32, #tpu.memory_space<vmem>>, vector<128x128xf32>
    %c0_3 = arith.constant 0 : index
    %c0_4 = arith.constant 0 : index
    %2 = vector.load %arg3[%c0_3, %c0_4] : memref<1x128xf32, #tpu.memory_space<vmem>>, vector<1x128xf32>
    %c0_5 = arith.constant 0 : index
    %c0_6 = arith.constant 0 : index
    %3 = vector.load %arg4[%c0_5, %c0_6] : memref<128x128xf32, #tpu.memory_space<vmem>>, vector<128x128xf32>
    %c0_7 = arith.constant 0 : index
    %c0_8 = arith.constant 0 : index
    %4 = vector.load %arg5[%c0_7, %c0_8] : memref<1x128xf32, #tpu.memory_space<vmem>>, vector<1x128xf32>
    %c0_9 = arith.constant 0 : index
    %c0_10 = arith.constant 0 : index
    %5 = vector.load %arg6[%c0_9, %c0_10] : memref<128x128xf32, #tpu.memory_space<vmem>>, vector<128x128xf32>
    %c0_11 = arith.constant 0 : index
    %c0_12 = arith.constant 0 : index
    %6 = vector.load %arg7[%c0_11, %c0_12] : memref<1x128xf32, #tpu.memory_space<vmem>>, vector<1x128xf32>
    %cst = arith.constant dense<0.000000e+00> : vector<8x128xf32>
    %7 = tpu.matmul %0, %1, %cst {dimension_numbers = #tpu.dot_dimension_numbers<[1], [0], [0], [1], [0, 0, 1, 1], [], []>} : vector<8x128xf32>, vector<128x128xf32>, vector<8x128xf32> -> vector<8x128xf32>
    %8 = vector.broadcast %2 : vector<1x128xf32> to vector<8x128xf32>
    %9 = arith.addf %7, %8 : vector<8x128xf32>
    %cst_13 = arith.constant 0.000000e+00 : f32
    %10 = vector.broadcast %cst_13 : f32 to vector<8x128xf32>
    %11 = arith.maximumf %9, %10 : vector<8x128xf32>
    %cst_14 = arith.constant dense<0.000000e+00> : vector<8x128xf32>
    %12 = tpu.matmul %11, %3, %cst_14 {dimension_numbers = #tpu.dot_dimension_numbers<[1], [0], [0], [1], [0, 0, 1, 1], [], []>} : vector<8x128xf32>, vector<128x128xf32>, vector<8x128xf32> -> vector<8x128xf32>
    %13 = vector.broadcast %4 : vector<1x128xf32> to vector<8x128xf32>
    %14 = arith.addf %12, %13 : vector<8x128xf32>
    %cst_15 = arith.constant 0.000000e+00 : f32
    %15 = vector.broadcast %cst_15 : f32 to vector<8x128xf32>
    %16 = arith.maximumf %14, %15 : vector<8x128xf32>
    %cst_16 = arith.constant dense<0.000000e+00> : vector<8x128xf32>
    %17 = tpu.matmul %16, %5, %cst_16 {dimension_numbers = #tpu.dot_dimension_numbers<[1], [0], [0], [1], [0, 0, 1, 1], [], []>} : vector<8x128xf32>, vector<128x128xf32>, vector<8x128xf32> -> vector<8x128xf32>
    %18 = vector.broadcast %6 : vector<1x128xf32> to vector<8x128xf32>
    %19 = arith.addf %17, %18 : vector<8x128xf32>
    %c0_17 = arith.constant 0 : index
    %c0_18 = arith.constant 0 : index
    %20 = vector.load %arg8[%c0_17, %c0_18] : memref<8x128xf32, #tpu.memory_space<vmem>>, vector<8x128xf32>
    tpu.vector_store %arg8[%c0_17, %c0_18], %19 {strides = array<i32>} : memref<8x128xf32, #tpu.memory_space<vmem>>, vector<8x128xf32>,
    return
  }
  func.func @transform_0(%arg0: i32) -> (i32, i32) {
    %c0_i32 = arith.constant 0 : i32
    %c0_i32_0 = arith.constant 0 : i32
    return %arg0, %c0_i32 : i32, i32
  }
  func.func @transform_1(%arg0: i32) -> (i32, i32) {
    %c0_i32 = arith.constant 0 : i32
    %c0_i32_0 = arith.constant 0 : i32
    %c0_i32_1 = arith.constant 0 : i32
    return %c0_i32, %c0_i32_0 : i32, i32
  }
  func.func @transform_2(%arg0: i32) -> (i32, i32) {
    %c0_i32 = arith.constant 0 : i32
    %c0_i32_0 = arith.constant 0 : i32
    %c0_i32_1 = arith.constant 0 : i32
    return %c0_i32, %c0_i32_0 : i32, i32
  }
  func.func @transform_3(%arg0: i32) -> (i32, i32) {
    %c0_i32 = arith.constant 0 : i32
    %c0_i32_0 = arith.constant 0 : i32
    %c0_i32_1 = arith.constant 0 : i32
    return %c0_i32, %c0_i32_0 : i32, i32
  }
  func.func @transform_4(%arg0: i32) -> (i32, i32) {
    %c0_i32 = arith.constant 0 : i32
    %c0_i32_0 = arith.constant 0 : i32
    %c0_i32_1 = arith.constant 0 : i32
    return %c0_i32, %c0_i32_0 : i32, i32
  }
  func.func @transform_5(%arg0: i32) -> (i32, i32) {
    %c0_i32 = arith.constant 0 : i32
    %c0_i32_0 = arith.constant 0 : i32
    %c0_i32_1 = arith.constant 0 : i32
    return %c0_i32, %c0_i32_0 : i32, i32
  }
  func.func @transform_6(%arg0: i32) -> (i32, i32) {
    %c0_i32 = arith.constant 0 : i32
    %c0_i32_0 = arith.constant 0 : i32
    %c0_i32_1 = arith.constant 0 : i32
    return %c0_i32, %c0_i32_0 : i32, i32
  }
  func.func @transform_7(%arg0: i32) -> (i32, i32) {
    %c0_i32 = arith.constant 0 : i32
    %c0_i32_0 = arith.constant 0 : i32
    return %arg0, %c0_i32 : i32, i32
  }
}

</mosaic_0001>

<llo_original>
// kernel: base_network_forward.1
$region0: #{base_network_forward.1}
  #allocation0 [shape = 'u32[]', space=smem, size = 0x4, offset = 0x4, fixed_abs, tag = 'smem constant byte address 0x4 - core index']
  #allocation1 [shape = 'u32[144,128]{1,0:T(1,128)}', space=vmem, size = 0x12000, scoped, tag = 'internal scratch']
  %s0 = inlined_call_operand.hbm [shape: f32[8,128], index: 0, kind: input, shape index: {}]
  %s1 = inlined_call_operand.hbm [shape: f32[128,128], index: 1, kind: input, shape index: {}]
  %s2 = inlined_call_operand.hbm [shape: f32[1,128], index: 2, kind: input, shape index: {}]
  %s3 = inlined_call_operand.hbm [shape: f32[128,128], index: 3, kind: input, shape index: {}]
  %s4 = inlined_call_operand.hbm [shape: f32[1,128], index: 4, kind: input, shape index: {}]
  %s5 = inlined_call_operand.hbm [shape: f32[128,128], index: 5, kind: input, shape index: {}]
  %s6 = inlined_call_operand.hbm [shape: f32[1,128], index: 6, kind: input, shape index: {}]
  %s7 = inlined_call_operand.hbm [shape: f32[8,128], index: 7, kind: output, shape index: {}]
  %s8 = sld [smem:[#allocation0]]
  $region66: #{base_network_forward.1} parent=0
    _
  %s10 = ssub.s32 1, %s8
  %s11 = scalar_select 0, %s10, %s8
  $region1: #{base_network_forward.1} parent=0
    #allocation2 [shape = 'u8[4096]{0}', space=vmem, size = 0x1000, scoped, tag = 'input window, operand 0, single buffered']
    #allocation3 [shape = 's32[1]{0}', space=sflag, size = 0x4, scoped, tag = 'scoped memory for base_network_forward.1']
    #allocation4 [shape = 's32[1]{0}', space=sflag, size = 0x4, scoped, tag = 'scoped memory for base_network_forward.1']
    #allocation5 [shape = 'u8[65536]{0}', space=vmem, size = 0x10000, scoped, tag = 'input window, operand 1, single buffered']
    #allocation6 [shape = 's32[1]{0}', space=sflag, size = 0x4, scoped, tag = 'scoped memory for base_network_forward.1']
    #allocation7 [shape = 'u8[512]{0}', space=vmem, size = 0x400, scoped, tag = 'input window, operand 2, single buffered']
    #allocation8 [shape = 'u8[65536]{0}', space=vmem, size = 0x10000, scoped, tag = 'input window, operand 3, single buffered']
    #allocation9 [shape = 's32[1]{0}', space=sflag, size = 0x4, scoped, tag = 'scoped memory for base_network_forward.1']
    #allocation10 [shape = 'u8[512]{0}', space=vmem, size = 0x400, scoped, tag = 'input window, operand 4, single buffered']
    #allocation11 [shape = 'u8[65536]{0}', space=vmem, size = 0x10000, scoped, tag = 'input window, operand 5, single buffered']
    #allocation12 [shape = 's32[1]{0}', space=sflag, size = 0x4, scoped, tag = 'scoped memory for base_network_forward.1']
    #allocation13 [shape = 'u8[512]{0}', space=vmem, size = 0x400, scoped, tag = 'input window, operand 6, single buffered']
    #allocation14 [shape = 'u8[4096]{0}', space=vmem, size = 0x1000, scoped, tag = 'output window, operand 0, single buffered']
    %12 = vsyncpa [#allocation3], 0
    %13 = vsyncpa [#allocation6], 0
    %14 = vsyncpa [#allocation9], 0
    %15 = vsyncpa [#allocation12], 0
    %16 = vsyncpa [#allocation4], 0
    // Predicated region
    $region2: #{base_network_forward.1} parent=1 // pred_check
      _
    $region3: #{base_network_forward.1} parent=1 // pred_check_branch
      %18 = sbr.rel (0) target = $region5
    $region4: #{base_network_forward.1} parent=1 // pred_region
      %s20 = ssub.s32 128, 128
      %21 = vsyncadd [#allocation3], %s20
      %s23 = sshll.u32 [#allocation2], 4
      %s24 = int_to_ptr.vmem [resolvable:$true] %s23
      %26 = dma.hbm_to_vmem [thread:$0]  %s0, 128, %s24, [#allocation3]
    $region5: #{base_network_forward.1} parent=1 // pred_fallthru
      _
    // Predicated region
    $region6: #{base_network_forward.1} parent=1 // pred_check
      _
    $region7: #{base_network_forward.1} parent=1 // pred_check_branch
      %28 = sbr.rel (0) target = $region9
    $region8: #{base_network_forward.1} parent=1 // pred_region
      %s30 = ssub.s32 2048, 2048
      %31 = vsyncadd [#allocation6], %s30
      %s32 = sshll.u32 [#allocation5], 4
      %s33 = int_to_ptr.vmem [resolvable:$true] %s32
      %38 = dma.hbm_to_vmem [thread:$0]  %s1, 2048, %s33, [#allocation6], 128, 128, 8
    $region9: #{base_network_forward.1} parent=1 // pred_fallthru
      _
    // Predicated region
    $region10: #{base_network_forward.1} parent=1 // pred_check
      _
    $region11: #{base_network_forward.1} parent=1 // pred_check_branch
      %40 = sbr.rel (0) target = $region13
    $region12: #{base_network_forward.1} parent=1 // pred_region
      %s42 = ssub.s32 16, 16
      %43 = vsyncadd [#allocation6], %s42
      %s45 = sshll.u32 [#allocation7], 4
      %s46 = int_to_ptr.vmem [resolvable:$true] %s45
      %48 = dma.hbm_to_vmem [thread:$0]  %s2, 16, %s46, [#allocation6]
    $region13: #{base_network_forward.1} parent=1 // pred_fallthru
      _
    // Predicated region
    $region14: #{base_network_forward.1} parent=1 // pred_check
      _
    $region15: #{base_network_forward.1} parent=1 // pred_check_branch
      %50 = sbr.rel (0) target = $region17
    $region16: #{base_network_forward.1} parent=1 // pred_region
      %s52 = ssub.s32 2048, 2048
      %53 = vsyncadd [#allocation9], %s52
      %s54 = sshll.u32 [#allocation8], 4
      %s55 = int_to_ptr.vmem [resolvable:$true] %s54
      %60 = dma.hbm_to_vmem [thread:$0]  %s3, 2048, %s55, [#allocation9], 128, 128, 8
    $region17: #{base_network_forward.1} parent=1 // pred_fallthru
      _
    // Predicated region
    $region18: #{base_network_forward.1} parent=1 // pred_check
      _
    $region19: #{base_network_forward.1} parent=1 // pred_check_branch
      %62 = sbr.rel (0) target = $region21
    $region20: #{base_network_forward.1} parent=1 // pred_region
      %s64 = ssub.s32 16, 16
      %65 = vsyncadd [#allocation9], %s64
      %s67 = sshll.u32 [#allocation10], 4
      %s68 = int_to_ptr.vmem [resolvable:$true] %s67
      %70 = dma.hbm_to_vmem [thread:$0]  %s4, 16, %s68, [#allocation9]
    $region21: #{base_network_forward.1} parent=1 // pred_fallthru
      _
    // Predicated region
    $region22: #{base_network_forward.1} parent=1 // pred_check
      _
    $region23: #{base_network_forward.1} parent=1 // pred_check_branch
      %72 = sbr.rel (0) target = $region25
    $region24: #{base_network_forward.1} parent=1 // pred_region
      %s74 = ssub.s32 2048, 2048
      %75 = vsyncadd [#allocation12], %s74
      %s76 = sshll.u32 [#allocation11], 4
      %s77 = int_to_ptr.vmem [resolvable:$true] %s76
      %82 = dma.hbm_to_vmem [thread:$0]  %s5, 2048, %s77, [#allocation12], 128, 128, 8
    $region25: #{base_network_forward.1} parent=1 // pred_fallthru
      _
    // Predicated region
    $region26: #{base_network_forward.1} parent=1 // pred_check
      _
    $region27: #{base_network_forward.1} parent=1 // pred_check_branch
      %84 = sbr.rel (0) target = $region29
    $region28: #{base_network_forward.1} parent=1 // pred_region
      %s86 = ssub.s32 16, 16
      %87 = vsyncadd [#allocation12], %s86
      %s89 = sshll.u32 [#allocation13], 4
      %s90 = int_to_ptr.vmem [resolvable:$true] %s89
      %92 = dma.hbm_to_vmem [thread:$0]  %s6, 16, %s90, [#allocation12]
    $region29: #{base_network_forward.1} parent=1 // pred_fallthru
      _
    // Predicated region
    $region30: #{base_network_forward.1} parent=1 // pred_check
      _
    $region31: #{base_network_forward.1} parent=1 // pred_check_branch
      %94 = sbr.rel (0) target = $region33
    $region32: #{base_network_forward.1} parent=1 // pred_region
      %95 = dma.done [#allocation3], 128
    $region33: #{base_network_forward.1} parent=1 // pred_fallthru
      _
    // Predicated region
    $region34: #{base_network_forward.1} parent=1 // pred_check
      _
    $region35: #{base_network_forward.1} parent=1 // pred_check_branch
      %97 = sbr.rel (0) target = $region37
    $region36: #{base_network_forward.1} parent=1 // pred_region
      %98 = dma.done [#allocation6], 2048
    $region37: #{base_network_forward.1} parent=1 // pred_fallthru
      _
    // Predicated region
    $region38: #{base_network_forward.1} parent=1 // pred_check
      _
    $region39: #{base_network_forward.1} parent=1 // pred_check_branch
      %100 = sbr.rel (0) target = $region41
    $region40: #{base_network_forward.1} parent=1 // pred_region
      %101 = dma.done [#allocation6], 16
    $region41: #{base_network_forward.1} parent=1 // pred_fallthru
      _
    // Predicated region
    $region42: #{base_network_forward.1} parent=1 // pred_check
      _
    $region43: #{base_network_forward.1} parent=1 // pred_check_branch
      %103 = sbr.rel (0) target = $region45
    $region44: #{base_network_forward.1} parent=1 // pred_region
      %104 = dma.done [#allocation9], 2048
    $region45: #{base_network_forward.1} parent=1 // pred_fallthru
      _
    // Predicated region
    $region46: #{base_network_forward.1} parent=1 // pred_check
      _
    $region47: #{base_network_forward.1} parent=1 // pred_check_branch
      %106 = sbr.rel (0) target = $region49
    $region48: #{base_network_forward.1} parent=1 // pred_region
      %107 = dma.done [#allocation9], 16
    $region49: #{base_network_forward.1} parent=1 // pred_fallthru
      _
    // Predicated region
    $region50: #{base_network_forward.1} parent=1 // pred_check
      _
    $region51: #{base_network_forward.1} parent=1 // pred_check_branch
      %109 = sbr.rel (0) target = $region53
    $region52: #{base_network_forward.1} parent=1 // pred_region
      %110 = dma.done [#allocation12], 2048
    $region53: #{base_network_forward.1} parent=1 // pred_fallthru
      _
    // Predicated region
    $region54: #{base_network_forward.1} parent=1 // pred_check
      _
    $region55: #{base_network_forward.1} parent=1 // pred_check_branch
      %112 = sbr.rel (0) target = $region57
    $region56: #{base_network_forward.1} parent=1 // pred_region
      %113 = dma.done [#allocation12], 16
    $region57: #{base_network_forward.1} parent=1 // pred_fallthru
      _
    %v114 = vld [vmem:[#allocation2] sm:$0xff]
    %v115 = vld [vmem:[#allocation5] sm:$0xff]
    %v116 = vld [vmem:[#allocation5 + $0x8] sm:$0xff]
    %v117 = vld [vmem:[#allocation5 + $0x10] sm:$0xff]
    %v118 = vld [vmem:[#allocation5 + $0x18] sm:$0xff]
    %v119 = vld [vmem:[#allocation5 + $0x20] sm:$0xff]
    %v120 = vld [vmem:[#allocation5 + $0x28] sm:$0xff]
    %v121 = vld [vmem:[#allocation5 + $0x30] sm:$0xff]
    %v122 = vld [vmem:[#allocation5 + $0x38] sm:$0xff]
    %v123 = vld [vmem:[#allocation5 + $0x40] sm:$0xff]
    %v124 = vld [vmem:[#allocation5 + $0x48] sm:$0xff]
    %v125 = vld [vmem:[#allocation5 + $0x50] sm:$0xff]
    %v126 = vld [vmem:[#allocation5 + $0x58] sm:$0xff]
    %v127 = vld [vmem:[#allocation5 + $0x60] sm:$0xff]
    %v128 = vld [vmem:[#allocation5 + $0x68] sm:$0xff]
    %v129 = vld [vmem:[#allocation5 + $0x70] sm:$0xff]
    %v130 = vld [vmem:[#allocation5 + $0x78] sm:$0xff]
    %v131 = vld [vmem:[#allocation7] sm:$0x1]
    %v132 = vld [vmem:[#allocation8] sm:$0xff]
    %v133 = vld [vmem:[#allocation8 + $0x8] sm:$0xff]
    %v134 = vld [vmem:[#allocation8 + $0x10] sm:$0xff]
    %v135 = vld [vmem:[#allocation8 + $0x18] sm:$0xff]
    %v136 = vld [vmem:[#allocation8 + $0x20] sm:$0xff]
    %v137 = vld [vmem:[#allocation8 + $0x28] sm:$0xff]
    %v138 = vld [vmem:[#allocation8 + $0x30] sm:$0xff]
    %v139 = vld [vmem:[#allocation8 + $0x38] sm:$0xff]
    %v140 = vld [vmem:[#allocation8 + $0x40] sm:$0xff]
    %v141 = vld [vmem:[#allocation8 + $0x48] sm:$0xff]
    %v142 = vld [vmem:[#allocation8 + $0x50] sm:$0xff]
    %v143 = vld [vmem:[#allocation8 + $0x58] sm:$0xff]
    %v144 = vld [vmem:[#allocation8 + $0x60] sm:$0xff]
    %v145 = vld [vmem:[#allocation8 + $0x68] sm:$0xff]
    %v146 = vld [vmem:[#allocation8 + $0x70] sm:$0xff]
    %v147 = vld [vmem:[#allocation8 + $0x78] sm:$0xff]
    %v148 = vld [vmem:[#allocation10] sm:$0x1]
    %v149 = vld [vmem:[#allocation11] sm:$0xff]
    %v150 = vld [vmem:[#allocation11 + $0x8] sm:$0xff]
    %v151 = vld [vmem:[#allocation11 + $0x10] sm:$0xff]
    %v152 = vld [vmem:[#allocation11 + $0x18] sm:$0xff]
    %v153 = vld [vmem:[#allocation11 + $0x20] sm:$0xff]
    %v154 = vld [vmem:[#allocation11 + $0x28] sm:$0xff]
    %v155 = vld [vmem:[#allocation11 + $0x30] sm:$0xff]
    %v156 = vld [vmem:[#allocation11 + $0x38] sm:$0xff]
    %v157 = vld [vmem:[#allocation11 + $0x40] sm:$0xff]
    %v158 = vld [vmem:[#allocation11 + $0x48] sm:$0xff]
    %v159 = vld [vmem:[#allocation11 + $0x50] sm:$0xff]
    %v160 = vld [vmem:[#allocation11 + $0x58] sm:$0xff]
    %v161 = vld [vmem:[#allocation11 + $0x60] sm:$0xff]
    %v162 = vld [vmem:[#allocation11 + $0x68] sm:$0xff]
    %v163 = vld [vmem:[#allocation11 + $0x70] sm:$0xff]
    %v164 = vld [vmem:[#allocation11 + $0x78] sm:$0xff]
    %v165 = vld [vmem:[#allocation13] sm:$0x1]
    %v167 = vlaneseq
    %v168 = vshrl.u32 %v167, 7
    %v169 = vsub.s32 0, %v168
    %v170 = vrot.slane %v131, %v169
    %172 = vmatprep.subr.mxu0 0.0
    %173 = vmatpush1.msra.mxu0 %v115
    %174 = vmatprep.subr.mxu0 0.0
    %175 = vmatpush1.msra.mxu0 %v116
    %176 = vmatprep.subr.mxu0 0.0
    %177 = vmatpush1.msra.mxu0 %v117
    %178 = vmatprep.subr.mxu0 0.0
    %179 = vmatpush1.msra.mxu0 %v118
    %180 = vmatprep.subr.mxu0 0.0
    %181 = vmatpush1.msra.mxu0 %v119
    %182 = vmatprep.subr.mxu0 0.0
    %183 = vmatpush1.msra.mxu0 %v120
    %184 = vmatprep.subr.mxu0 0.0
    %185 = vmatpush1.msra.mxu0 %v121
    %186 = vmatprep.subr.mxu0 0.0
    %187 = vmatpush1.msra.mxu0 %v122
    %188 = vmatprep.subr.mxu0 0.0
    %189 = vmatpush1.msra.mxu0 %v123
    %190 = vmatprep.subr.mxu0 0.0
    %191 = vmatpush1.msra.mxu0 %v124
    %192 = vmatprep.subr.mxu0 0.0
    %193 = vmatpush1.msra.mxu0 %v125
    %194 = vmatprep.subr.mxu0 0.0
    %195 = vmatpush1.msra.mxu0 %v126
    %196 = vmatprep.subr.mxu0 0.0
    %197 = vmatpush1.msra.mxu0 %v127
    %198 = vmatprep.subr.mxu0 0.0
    %199 = vmatpush1.msra.mxu0 %v128
    %200 = vmatprep.subr.mxu0 0.0
    %201 = vmatpush1.msra.mxu0 %v129
    %202 = vmatprep.subr.mxu0 0.0
    %203 = vmatpush1.msra.mxu0 %v130
    %204 = vmatprep.subr.mxu0 0.0
    %205 = vmatpush1.msra.mxu0 0.0
    %206 = vmatprep.subr.mxu0 0.0
    %207 = vmatpush1.msra.mxu0 0.0
    %208 = vmatprep.subr.mxu0 0.0
    %209 = vmatpush1.msra.mxu0 0.0
    %210 = vmatprep.subr.mxu0 0.0
    %211 = vmatpush1.msra.mxu0 0.0
    %212 = vmatprep.subr.mxu0 0.0
    %213 = vmatpush1.msra.mxu0 0.0
    %214 = vmatprep.subr.mxu0 0.0
    %215 = vmatpush1.msra.mxu0 0.0
    %216 = vmatprep.subr.mxu0 0.0
    %217 = vmatpush1.msra.mxu0 0.0
    %218 = vmatprep.subr.mxu0 0.0
    %219 = vmatpush1.msra.mxu0 0.0
    %220 = vmatprep.subr.mxu0 0.0
    %221 = vmatpush1.msra.mxu0 0.0
    %222 = vmatprep.subr.mxu0 0.0
    %223 = vmatpush1.msra.mxu0 0.0
    %224 = vmatprep.subr.mxu0 0.0
    %225 = vmatpush1.msra.mxu0 0.0
    %226 = vmatprep.subr.mxu0 0.0
    %227 = vmatpush1.msra.mxu0 0.0
    %228 = vmatprep.subr.mxu0 0.0
    %229 = vmatpush1.msra.mxu0 0.0
    %230 = vmatprep.subr.mxu0 0.0
    %231 = vmatpush1.msra.mxu0 0.0
    %232 = vmatprep.subr.mxu0 0.0
    %233 = vmatpush1.msra.mxu0 0.0
    %234 = vmatprep.subr.mxu0 0.0
    %235 = vmatpush1.msra.mxu0 0.0
    %236 = vmatprep.mubr.f32.mxu0 0.0
    %237 = vmatmul.mubr.f32.gmra.mrb[0].mxu0 %v114
    %v238 = vpop.f32.mrb[0].mxu0
    %v239 = vadd.f32 %v170, %v238
    %v240 = vpop.f32.mrb[0].mxu0
    %241 = vdwg.mxu0
    %v242 = vmax.f32 %v239, 0.0
    %v244 = vlaneseq
    %v245 = vshrl.u32 %v244, 7
    %v246 = vsub.s32 0, %v245
    %v247 = vrot.slane %v148, %v246
    %249 = vmatprep.subr.mxu0 0.0
    %250 = vmatpush1.msra.mxu0 %v132
    %251 = vmatprep.subr.mxu0 0.0
    %252 = vmatpush1.msra.mxu0 %v133
    %253 = vmatprep.subr.mxu0 0.0
    %254 = vmatpush1.msra.mxu0 %v134
    %255 = vmatprep.subr.mxu0 0.0
    %256 = vmatpush1.msra.mxu0 %v135
    %257 = vmatprep.subr.mxu0 0.0
    %258 = vmatpush1.msra.mxu0 %v136
    %259 = vmatprep.subr.mxu0 0.0
    %260 = vmatpush1.msra.mxu0 %v137
    %261 = vmatprep.subr.mxu0 0.0
    %262 = vmatpush1.msra.mxu0 %v138
    %263 = vmatprep.subr.mxu0 0.0
    %264 = vmatpush1.msra.mxu0 %v139
    %265 = vmatprep.subr.mxu0 0.0
    %266 = vmatpush1.msra.mxu0 %v140
    %267 = vmatprep.subr.mxu0 0.0
    %268 = vmatpush1.msra.mxu0 %v141
    %269 = vmatprep.subr.mxu0 0.0
    %270 = vmatpush1.msra.mxu0 %v142
    %271 = vmatprep.subr.mxu0 0.0
    %272 = vmatpush1.msra.mxu0 %v143
    %273 = vmatprep.subr.mxu0 0.0
    %274 = vmatpush1.msra.mxu0 %v144
    %275 = vmatprep.subr.mxu0 0.0
    %276 = vmatpush1.msra.mxu0 %v145
    %277 = vmatprep.subr.mxu0 0.0
    %278 = vmatpush1.msra.mxu0 %v146
    %279 = vmatprep.subr.mxu0 0.0
    %280 = vmatpush1.msra.mxu0 %v147
    %281 = vmatprep.subr.mxu0 0.0
    %282 = vmatpush1.msra.mxu0 0.0
    %283 = vmatprep.subr.mxu0 0.0
    %284 = vmatpush1.msra.mxu0 0.0
    %285 = vmatprep.subr.mxu0 0.0
    %286 = vmatpush1.msra.mxu0 0.0
    %287 = vmatprep.subr.mxu0 0.0
    %288 = vmatpush1.msra.mxu0 0.0
    %289 = vmatprep.subr.mxu0 0.0
    %290 = vmatpush1.msra.mxu0 0.0
    %291 = vmatprep.subr.mxu0 0.0
    %292 = vmatpush1.msra.mxu0 0.0
    %293 = vmatprep.subr.mxu0 0.0
    %294 = vmatpush1.msra.mxu0 0.0
    %295 = vmatprep.subr.mxu0 0.0
    %296 = vmatpush1.msra.mxu0 0.0
    %297 = vmatprep.subr.mxu0 0.0
    %298 = vmatpush1.msra.mxu0 0.0
    %299 = vmatprep.subr.mxu0 0.0
    %300 = vmatpush1.msra.mxu0 0.0
    %301 = vmatprep.subr.mxu0 0.0
    %302 = vmatpush1.msra.mxu0 0.0
    %303 = vmatprep.subr.mxu0 0.0
    %304 = vmatpush1.msra.mxu0 0.0
    %305 = vmatprep.subr.mxu0 0.0
    %306 = vmatpush1.msra.mxu0 0.0
    %307 = vmatprep.subr.mxu0 0.0
    %308 = vmatpush1.msra.mxu0 0.0
    %309 = vmatprep.subr.mxu0 0.0
    %310 = vmatpush1.msra.mxu0 0.0
    %311 = vmatprep.subr.mxu0 0.0
    %312 = vmatpush1.msra.mxu0 0.0
    %313 = vmatprep.mubr.f32.mxu0 0.0
    %314 = vmatmul.mubr.f32.gmra.mrb[0].mxu0 %v242
    %v315 = vpop.f32.mrb[0].mxu0
    %v316 = vadd.f32 %v247, %v315
    %v317 = vpop.f32.mrb[0].mxu0
    %318 = vdwg.mxu0
    %v319 = vmax.f32 %v316, 0.0
    %v321 = vlaneseq
    %v322 = vshrl.u32 %v321, 7
    %v323 = vsub.s32 0, %v322
    %v324 = vrot.slane %v165, %v323
    %326 = vmatprep.subr.mxu0 0.0
    %327 = vmatpush1.msra.mxu0 %v149
    %328 = vmatprep.subr.mxu0 0.0
    %329 = vmatpush1.msra.mxu0 %v150
    %330 = vmatprep.subr.mxu0 0.0
    %331 = vmatpush1.msra.mxu0 %v151
    %332 = vmatprep.subr.mxu0 0.0
    %333 = vmatpush1.msra.mxu0 %v152
    %334 = vmatprep.subr.mxu0 0.0
    %335 = vmatpush1.msra.mxu0 %v153
    %336 = vmatprep.subr.mxu0 0.0
    %337 = vmatpush1.msra.mxu0 %v154
    %338 = vmatprep.subr.mxu0 0.0
    %339 = vmatpush1.msra.mxu0 %v155
    %340 = vmatprep.subr.mxu0 0.0
    %341 = vmatpush1.msra.mxu0 %v156
    %342 = vmatprep.subr.mxu0 0.0
    %343 = vmatpush1.msra.mxu0 %v157
    %344 = vmatprep.subr.mxu0 0.0
    %345 = vmatpush1.msra.mxu0 %v158
    %346 = vmatprep.subr.mxu0 0.0
    %347 = vmatpush1.msra.mxu0 %v159
    %348 = vmatprep.subr.mxu0 0.0
    %349 = vmatpush1.msra.mxu0 %v160
    %350 = vmatprep.subr.mxu0 0.0
    %351 = vmatpush1.msra.mxu0 %v161
    %352 = vmatprep.subr.mxu0 0.0
    %353 = vmatpush1.msra.mxu0 %v162
    %354 = vmatprep.subr.mxu0 0.0
    %355 = vmatpush1.msra.mxu0 %v163
    %356 = vmatprep.subr.mxu0 0.0
    %357 = vmatpush1.msra.mxu0 %v164
    %358 = vmatprep.subr.mxu0 0.0
    %359 = vmatpush1.msra.mxu0 0.0
    %360 = vmatprep.subr.mxu0 0.0
    %361 = vmatpush1.msra.mxu0 0.0
    %362 = vmatprep.subr.mxu0 0.0
    %363 = vmatpush1.msra.mxu0 0.0
    %364 = vmatprep.subr.mxu0 0.0
    %365 = vmatpush1.msra.mxu0 0.0
    %366 = vmatprep.subr.mxu0 0.0
    %367 = vmatpush1.msra.mxu0 0.0
    %368 = vmatprep.subr.mxu0 0.0
    %369 = vmatpush1.msra.mxu0 0.0
    %370 = vmatprep.subr.mxu0 0.0
    %371 = vmatpush1.msra.mxu0 0.0
    %372 = vmatprep.subr.mxu0 0.0
    %373 = vmatpush1.msra.mxu0 0.0
    %374 = vmatprep.subr.mxu0 0.0
    %375 = vmatpush1.msra.mxu0 0.0
    %376 = vmatprep.subr.mxu0 0.0
    %377 = vmatpush1.msra.mxu0 0.0
    %378 = vmatprep.subr.mxu0 0.0
    %379 = vmatpush1.msra.mxu0 0.0
    %380 = vmatprep.subr.mxu0 0.0
    %381 = vmatpush1.msra.mxu0 0.0
    %382 = vmatprep.subr.mxu0 0.0
    %383 = vmatpush1.msra.mxu0 0.0
    %384 = vmatprep.subr.mxu0 0.0
    %385 = vmatpush1.msra.mxu0 0.0
    %386 = vmatprep.subr.mxu0 0.0
    %387 = vmatpush1.msra.mxu0 0.0
    %388 = vmatprep.subr.mxu0 0.0
    %389 = vmatpush1.msra.mxu0 0.0
    %390 = vmatprep.mubr.f32.mxu0 0.0
    %391 = vmatmul.mubr.f32.gmra.mrb[0].mxu0 %v319
    %v392 = vpop.f32.mrb[0].mxu0
    %v393 = vadd.f32 %v324, %v392
    %v394 = vpop.f32.mrb[0].mxu0
    %395 = vdwg.mxu0
    %396 = vst [vmem:[#allocation14] sm:$0xff] %v393
    // Predicated region
    $region58: #{base_network_forward.1} parent=1 // pred_check
      _
    $region59: #{base_network_forward.1} parent=1 // pred_check_branch
      %398 = sbr.rel (0) target = $region61
    $region60: #{base_network_forward.1} parent=1 // pred_region
      %s400 = ssub.s32 128, 128
      %401 = vsyncadd [#allocation4], %s400
      %s403 = sshll.u32 [#allocation14], 4
      %s404 = int_to_ptr.vmem [resolvable:$true] %s403
      %406 = dma.vmem_to_hbm [thread:$0]  %s404, 128, %s7, [#allocation4]
    $region61: #{base_network_forward.1} parent=1 // pred_fallthru
      _
    // Predicated region
    $region62: #{base_network_forward.1} parent=1 // pred_check
      _
    $region63: #{base_network_forward.1} parent=1 // pred_check_branch
      %408 = sbr.rel (0) target = $region65
    $region64: #{base_network_forward.1} parent=1 // pred_region
      %409 = dma.done [#allocation4], 128
    $region65: #{base_network_forward.1} parent=1 // pred_fallthru
      _
    %410 = vsyncpa [#allocation3], 1
    %411 = vsyncpa [#allocation6], 1
    %412 = vsyncpa [#allocation9], 1
    %413 = vsyncpa [#allocation12], 1
    %414 = vsyncpa [#allocation4], 1

</llo_original>
